<compile_context>
chip_gen: v7x
topology: tpu7x:2x2x1
jax: 0.10.0
libtpu: 0.0.40
codegen_flags: <defaults>
</compile_context>

<pallas_src>
import functools

import jax
import jax.numpy as jnp
from jax.experimental import pallas as pl
from jax.experimental.pallas import tpu as pltpu

EPS = 1e-5


def _conv_stats_kernel(xf_ref, w_ref, y_ref, st_ref, rhs_ref,
                       *, taps, cin, stride, wc, wo, lo):
    # xf_ref : (1, s*s, Cin, Lq)  phase-split, row-flattened padded input
    # w_ref  : (Cout, KK*Cin)     merged weights, resident across the grid
    # y_ref  : (1, Cout, Lo)      conv output, "wide" rows (Wc cols/row, Wo valid)
    # st_ref : (1, Cout, 2)       per-sample partial [sum, sum-of-squares]
    # rhs_ref: (KK*Cin, Lo)       VMEM scratch RHS for the single MXU dot
    for t, (di, dj) in enumerate(taps):
        phase = (di % stride) * stride + (dj % stride)
        start = (di // stride) * wc + (dj // stride)          # static python int
        rhs_ref[t * cin:(t + 1) * cin, :] = xf_ref[0, phase, :, start:start + lo]

    # ONE contraction over K = KK*Cin instead of KK tiny-K dots + VPU adds.
    acc = jnp.dot(w_ref[...], rhs_ref[...], preferred_element_type=jnp.float32)
    y_ref[0] = acc.astype(y_ref.dtype)

    # BN batch statistics over the valid lanes only (mask the Wc-Wo junk cols).
    lane = jax.lax.broadcasted_iota(jnp.int32, (1, lo), 1)
    valid = (lane % wc) < wo
    am = jnp.where(valid, acc, 0.0)
    st_ref[0, :, 0:1] = jnp.sum(am, axis=1, keepdims=True)
    st_ref[0, :, 1:2] = jnp.sum(am * am, axis=1, keepdims=True)


def _bn_relu_kernel(y_ref, aff_ref, o_ref, *, ho, wc, wo):
    # y_ref  : (R, Ho*Wc)  wide conv output rows (R = N*Cout), lane-dense
    # aff_ref: (R, 2)      fused BN affine per row: [:,0]=scale, [:,1]=shift
    # o_ref  : (R, Ho*Wo)  final flat lane-dense output (NCHW reshape is outside)
    a = jnp.maximum(y_ref[...] * aff_ref[:, 0:1] + aff_ref[:, 1:2], 0.0)
    rows = [a[:, h * wc:h * wc + wo] for h in range(ho)]      # static lane slices
    o_ref[...] = jnp.concatenate(rows, axis=1).astype(o_ref.dtype)


@functools.partial(jax.jit, static_argnames=("kernel_size", "stride", "padding"))
def spatial_view_conv(x, weight, bias, gamma, beta, *, kernel_size, stride=1, padding=1):
    """x: (N, Cin, H, W) NCHW.  weight: (Cout, Cin, KH, KW) OIHW.  Returns NCHW f32."""
    del bias  # train-mode BN subtracts the batch mean -> conv bias cancels exactly
    N, Cin, H, W = x.shape
    Cout = weight.shape[0]
    kh = kw = int(kernel_size)
    s = int(stride)
    p = int(padding)

    Hp, Wp = H + 2 * p, W + 2 * p
    Ho = (Hp - kh) // s + 1
    Wo = (Wp - kw) // s + 1
    Wc = -(-Wp // s)                 # padded (per-phase) row width
    Hq = -(-Hp // s) + 1             # +1 slack row so every tap's wide slice is in-bounds
    S2 = s * s
    KK = kh * kw
    KKC = KK * Cin
    Lq = Hq * Wc                     # flattened per-phase image length
    Lo = Ho * Wc                     # "wide" output row-major length (Wo valid of each Wc)

    # Conv padding + phase padding in one pad; then split rows/cols into s phases
    # and flatten (rows, cols) so every kernel tap becomes a contiguous lane slice.
    # TODO(synk): for stride > 1 the phase-split transpose is an extra HBM pass of
    # the padded input; it could be replaced with strided in-kernel loads.  For the
    # stride == 1 path the phase axes are size-1, so the transpose is free.
    xq = jnp.pad(x.astype(jnp.float32),
                 ((0, 0), (0, 0), (p, Hq * s - Hp + p), (p, Wc * s - Wp + p)))
    xph = xq.reshape(N, Cin, Hq, s, Wc, s).transpose(0, 3, 5, 1, 2, 4)
    xf = xph.reshape(N, S2, Cin, Lq)

    # (Cout, Cin, KH, KW) -> single merged LHS (Cout, KK*Cin); column order (di, dj, cin)
    # matches the RHS row order built in the kernel.
    wt = weight.astype(jnp.float32).transpose(0, 2, 3, 1).reshape(Cout, KKC)
    taps = tuple((di, dj) for di in range(kh) for dj in range(kw))

    # ---- Pass 1: fused conv (single MXU dot) + per-sample partial BN stats ----
    # TODO(synk): for large Cin*H*W add a halo-tiled spatial grid axis to bound
    # per-step VMEM (relevant for v7x's 64 MiB); at these shapes one block/sample fits.
    kern1 = functools.partial(_conv_stats_kernel, taps=taps, cin=Cin,
                              stride=s, wc=Wc, wo=Wo, lo=Lo)
    y, st = pl.pallas_call(
        kern1,
        out_shape=(jax.ShapeDtypeStruct((N, Cout, Lo), jnp.float32),
                   jax.ShapeDtypeStruct((N, Cout, 2), jnp.float32)),
        grid=(N,),
        in_specs=[
            pl.BlockSpec((1, S2, Cin, Lq), lambda n: (n, 0, 0, 0)),
            pl.BlockSpec((Cout, KKC), lambda n: (0, 0)),         # resident weights
        ],
        out_specs=(
            pl.BlockSpec((1, Cout, Lo), lambda n: (n, 0, 0)),
            pl.BlockSpec((1, Cout, 2), lambda n: (n, 0, 0)),
        ),
        scratch_shapes=[pltpu.VMEM((KKC, Lo), jnp.float32)],
        compiler_params=pltpu.CompilerParams(dimension_semantics=("parallel",)),
        cost_estimate=pl.CostEstimate(
            flops=2 * N * Cout * KKC * Lo,
            transcendentals=0,
            bytes_accessed=4 * (xf.size + wt.size + N * Cout * Lo + N * Cout * 2)),
    )(xf, wt)

    # ---- Tiny cross-sample reduction + fused BN affine precompute -------------
    cnt = float(N * Ho * Wo)
    mean = st[:, :, 0].sum(axis=0) / cnt
    ex2 = st[:, :, 1].sum(axis=0) / cnt
    # E[x^2]-E[x]^2 in f32 (clamp guards tiny negative cancellation); fine for
    # conv outputs whose batch mean is not huge relative to their std.
    var = jnp.maximum(ex2 - mean * mean, 0.0)
    scale = gamma.astype(jnp.float32) * jax.lax.rsqrt(var + EPS)
    shift = beta.astype(jnp.float32) - mean * scale

    # ---- Pass 2: lane-dense scale/shift + ReLU + Wc -> Wo compaction ----------
    R = N * Cout
    y2 = y.reshape(R, Lo)                                       # free leading-dim merge
    aff = jnp.tile(jnp.stack([scale, shift], axis=-1), (N, 1))  # (R, 2), row-matched to y2
    kern2 = functools.partial(_bn_relu_kernel, ho=Ho, wc=Wc, wo=Wo)
    # TODO(synk): for very large N*Cout tile the row axis; one block is ideal here.
    out = pl.pallas_call(
        kern2,
        out_shape=jax.ShapeDtypeStruct((R, Ho * Wo), jnp.float32),
        grid=(1,),
        in_specs=[
            pl.BlockSpec((R, Lo), lambda i: (0, 0)),
            pl.BlockSpec((R, 2), lambda i: (0, 0)),
        ],
        out_specs=pl.BlockSpec((R, Ho * Wo), lambda i: (0, 0)),
        compiler_params=pltpu.CompilerParams(dimension_semantics=("arbitrary",)),
        cost_estimate=pl.CostEstimate(
            flops=2 * R * Ho * Wo,
            transcendentals=0,
            bytes_accessed=4 * (R * Lo + R * Ho * Wo + R * 2)),
    )(y2, aff)
    return out.reshape(N, Cout, Ho, Wo)
    # TODO(synk): BatchNorm2d running-stats update (training side effect) is not
    # part of the returned tensor and is not emitted here (would need bias re-added
    # to the mean if implemented).


def _reference(x, weight, bias, gamma, beta, stride, padding):
    y = jax.lax.conv_general_dilated(
        x, weight, window_strides=(stride, stride),
        padding=[(padding, padding), (padding, padding)],
        dimension_numbers=("NCHW", "OIHW", "NCHW"),
        precision=jax.lax.Precision.HIGHEST)
    y = y + bias.reshape(1, -1, 1, 1)
    mean = y.mean(axis=(0, 2, 3), keepdims=True)
    var = ((y - mean) ** 2).mean(axis=(0, 2, 3), keepdims=True)
    yhat = (y - mean) * jax.lax.rsqrt(var + EPS)
    out = gamma.reshape(1, -1, 1, 1) * yhat + beta.reshape(1, -1, 1, 1)
    return jnp.maximum(out, 0.0)


if __name__ == "__main__":
    # SpatialViewConv(inp_channel=4, oup_channel=8, kernel_size=3, stride=1, padding=1)
    N, Cin, H, W = 2, 4, 16, 16
    Cout, ks, stride, padding = 8, 3, 1, 1

    key = jax.random.PRNGKey(0)
    kx, kw_, kb, kg, kbe = jax.random.split(key, 5)
    x = jax.random.normal(kx, (N, Cin, H, W), dtype=jnp.float32)
    weight = jax.random.normal(kw_, (Cout, Cin, ks, ks), dtype=jnp.float32) * 0.1
    bias = jax.random.normal(kb, (Cout,), dtype=jnp.float32) * 0.1
    gamma = 1.0 + 0.1 * jax.random.normal(kg, (Cout,), dtype=jnp.float32)
    beta = 0.1 * jax.random.normal(kbe, (Cout,), dtype=jnp.float32)

    out = spatial_view_conv(x, weight, bias, gamma, beta,
                            kernel_size=ks, stride=stride, padding=padding)
    out = jax.block_until_ready(out)

    ref = _reference(x, weight, bias, gamma, beta, stride, padding)
    assert out.shape == (N, Cout, H, W), out.shape
    err = float(jnp.abs(out - ref).max())
    assert jnp.allclose(out, ref, atol=1e-3, rtol=1e-3), err

    print("KERNEL_OK")
</pallas_src>

<mosaic_0001>
module attributes {stable_mosaic.version = 11 : i64} {
  func.func @_conv_stats_kernel(%arg0: i32, %arg1: memref<1x1x4x342xf32, #tpu.memory_space<vmem>>, %arg2: memref<8x36xf32, #tpu.memory_space<vmem>>, %arg3: memref<1x8x288xf32, #tpu.memory_space<vmem>>, %arg4: memref<1x8x2xf32, #tpu.memory_space<vmem>>, %arg5: memref<36x288xf32, #tpu.memory_space<vmem>>) attributes {dimension_semantics = [#tpu.dimension_semantics<parallel>], iteration_bounds = array<i64: 2>, scalar_prefetch = 0 : i64, scratch_operands = 1 : i64, tpu.core_type = #tpu.core_type<tc>, window_params = [{transform_indices = @transform_0, window_bounds = array<i64: 1, 1, 4, 342>}, {pipeline_mode = #tpu.pipeline_mode<synchronous>, transform_indices = @transform_1, window_bounds = array<i64: 8, 36>}, {transform_indices = @transform_2, window_bounds = array<i64: 1, 8, 288>}, {transform_indices = @transform_3, window_bounds = array<i64: 1, 8, 2>}]} {
    %c0 = arith.constant 0 : index
    %c0_0 = arith.constant 0 : index
    %c0_1 = arith.constant 0 : index
    %c0_2 = arith.constant 0 : index
    %0 = vector.load %arg1[%c0, %c0_0, %c0_1, %c0_2] : memref<1x1x4x342xf32, #tpu.memory_space<vmem>>, vector<1x1x4x288xf32>
    %1 = vector.shape_cast %0 : vector<1x1x4x288xf32> to vector<4x288xf32>
    %c0_3 = arith.constant 0 : index
    %c0_4 = arith.constant 0 : index
    %2 = vector.load %arg5[%c0_3, %c0_4] : memref<36x288xf32, #tpu.memory_space<vmem>>, vector<4x288xf32>
    tpu.vector_store %arg5[%c0_3, %c0_4], %1 {strides = array<i32>} : memref<36x288xf32, #tpu.memory_space<vmem>>, vector<4x288xf32>,
    %c0_5 = arith.constant 0 : index
    %c0_6 = arith.constant 0 : index
    %c0_7 = arith.constant 0 : index
    %c1 = arith.constant 1 : index
    %3 = vector.load %arg1[%c0_5, %c0_6, %c0_7, %c1] : memref<1x1x4x342xf32, #tpu.memory_space<vmem>>, vector<1x1x4x288xf32>
    %4 = vector.shape_cast %3 : vector<1x1x4x288xf32> to vector<4x288xf32>
    %c4 = arith.constant 4 : index
    %c0_8 = arith.constant 0 : index
    %5 = vector.load %arg5[%c4, %c0_8] : memref<36x288xf32, #tpu.memory_space<vmem>>, vector<4x288xf32>
    tpu.vector_store %arg5[%c4, %c0_8], %4 {strides = array<i32>} : memref<36x288xf32, #tpu.memory_space<vmem>>, vector<4x288xf32>,
    %c0_9 = arith.constant 0 : index
    %c0_10 = arith.constant 0 : index
    %c0_11 = arith.constant 0 : index
    %c2 = arith.constant 2 : index
    %6 = vector.load %arg1[%c0_9, %c0_10, %c0_11, %c2] : memref<1x1x4x342xf32, #tpu.memory_space<vmem>>, vector<1x1x4x288xf32>
    %7 = vector.shape_cast %6 : vector<1x1x4x288xf32> to vector<4x288xf32>
    %c8 = arith.constant 8 : index
    %c0_12 = arith.constant 0 : index
    %8 = vector.load %arg5[%c8, %c0_12] : memref<36x288xf32, #tpu.memory_space<vmem>>, vector<4x288xf32>
    tpu.vector_store %arg5[%c8, %c0_12], %7 {strides = array<i32>} : memref<36x288xf32, #tpu.memory_space<vmem>>, vector<4x288xf32>,
    %c0_13 = arith.constant 0 : index
    %c0_14 = arith.constant 0 : index
    %c0_15 = arith.constant 0 : index
    %c18 = arith.constant 18 : index
    %9 = vector.load %arg1[%c0_13, %c0_14, %c0_15, %c18] : memref<1x1x4x342xf32, #tpu.memory_space<vmem>>, vector<1x1x4x288xf32>
    %10 = vector.shape_cast %9 : vector<1x1x4x288xf32> to vector<4x288xf32>
    %c12 = arith.constant 12 : index
    %c0_16 = arith.constant 0 : index
    %11 = vector.load %arg5[%c12, %c0_16] : memref<36x288xf32, #tpu.memory_space<vmem>>, vector<4x288xf32>
    tpu.vector_store %arg5[%c12, %c0_16], %10 {strides = array<i32>} : memref<36x288xf32, #tpu.memory_space<vmem>>, vector<4x288xf32>,
    %c0_17 = arith.constant 0 : index
    %c0_18 = arith.constant 0 : index
    %c0_19 = arith.constant 0 : index
    %c19 = arith.constant 19 : index
    %12 = vector.load %arg1[%c0_17, %c0_18, %c0_19, %c19] : memref<1x1x4x342xf32, #tpu.memory_space<vmem>>, vector<1x1x4x288xf32>
    %13 = vector.shape_cast %12 : vector<1x1x4x288xf32> to vector<4x288xf32>
    %c16 = arith.constant 16 : index
    %c0_20 = arith.constant 0 : index
    %14 = vector.load %arg5[%c16, %c0_20] : memref<36x288xf32, #tpu.memory_space<vmem>>, vector<4x288xf32>
    tpu.vector_store %arg5[%c16, %c0_20], %13 {strides = array<i32>} : memref<36x288xf32, #tpu.memory_space<vmem>>, vector<4x288xf32>,
    %c0_21 = arith.constant 0 : index
    %c0_22 = arith.constant 0 : index
    %c0_23 = arith.constant 0 : index
    %c20 = arith.constant 20 : index
    %15 = vector.load %arg1[%c0_21, %c0_22, %c0_23, %c20] : memref<1x1x4x342xf32, #tpu.memory_space<vmem>>, vector<1x1x4x288xf32>
    %16 = vector.shape_cast %15 : vector<1x1x4x288xf32> to vector<4x288xf32>
    %c20_24 = arith.constant 20 : index
    %c0_25 = arith.constant 0 : index
    %17 = vector.load %arg5[%c20_24, %c0_25] : memref<36x288xf32, #tpu.memory_space<vmem>>, vector<4x288xf32>
    tpu.vector_store %arg5[%c20_24, %c0_25], %16 {strides = array<i32>} : memref<36x288xf32, #tpu.memory_space<vmem>>, vector<4x288xf32>,
    %c0_26 = arith.constant 0 : index
    %c0_27 = arith.constant 0 : index
    %c0_28 = arith.constant 0 : index
    %c36 = arith.constant 36 : index
    %18 = vector.load %arg1[%c0_26, %c0_27, %c0_28, %c36] : memref<1x1x4x342xf32, #tpu.memory_space<vmem>>, vector<1x1x4x288xf32>
    %19 = vector.shape_cast %18 : vector<1x1x4x288xf32> to vector<4x288xf32>
    %c24 = arith.constant 24 : index
    %c0_29 = arith.constant 0 : index
    %20 = vector.load %arg5[%c24, %c0_29] : memref<36x288xf32, #tpu.memory_space<vmem>>, vector<4x288xf32>
    tpu.vector_store %arg5[%c24, %c0_29], %19 {strides = array<i32>} : memref<36x288xf32, #tpu.memory_space<vmem>>, vector<4x288xf32>,
    %c0_30 = arith.constant 0 : index
    %c0_31 = arith.constant 0 : index
    %c0_32 = arith.constant 0 : index
    %c37 = arith.constant 37 : index
    %21 = vector.load %arg1[%c0_30, %c0_31, %c0_32, %c37] : memref<1x1x4x342xf32, #tpu.memory_space<vmem>>, vector<1x1x4x288xf32>
    %22 = vector.shape_cast %21 : vector<1x1x4x288xf32> to vector<4x288xf32>
    %c28 = arith.constant 28 : index
    %c0_33 = arith.constant 0 : index
    %23 = vector.load %arg5[%c28, %c0_33] : memref<36x288xf32, #tpu.memory_space<vmem>>, vector<4x288xf32>
    tpu.vector_store %arg5[%c28, %c0_33], %22 {strides = array<i32>} : memref<36x288xf32, #tpu.memory_space<vmem>>, vector<4x288xf32>,
    %c0_34 = arith.constant 0 : index
    %c0_35 = arith.constant 0 : index
    %c0_36 = arith.constant 0 : index
    %c38 = arith.constant 38 : index
    %24 = vector.load %arg1[%c0_34, %c0_35, %c0_36, %c38] : memref<1x1x4x342xf32, #tpu.memory_space<vmem>>, vector<1x1x4x288xf32>
    %25 = vector.shape_cast %24 : vector<1x1x4x288xf32> to vector<4x288xf32>
    %c32 = arith.constant 32 : index
    %c0_37 = arith.constant 0 : index
    %26 = vector.load %arg5[%c32, %c0_37] : memref<36x288xf32, #tpu.memory_space<vmem>>, vector<4x288xf32>
    tpu.vector_store %arg5[%c32, %c0_37], %25 {strides = array<i32>} : memref<36x288xf32, #tpu.memory_space<vmem>>, vector<4x288xf32>,
    %c0_38 = arith.constant 0 : index
    %c0_39 = arith.constant 0 : index
    %27 = vector.load %arg2[%c0_38, %c0_39] : memref<8x36xf32, #tpu.memory_space<vmem>>, vector<8x36xf32>
    %c0_40 = arith.constant 0 : index
    %c0_41 = arith.constant 0 : index
    %28 = vector.load %arg5[%c0_40, %c0_41] : memref<36x288xf32, #tpu.memory_space<vmem>>, vector<36x288xf32>
    %cst = arith.constant dense<0.000000e+00> : vector<8x288xf32>
    %29 = tpu.matmul %27, %28, %cst {dimension_numbers = #tpu.dot_dimension_numbers<[1], [0], [0], [1], [0, 0, 1, 1], [], []>} : vector<8x36xf32>, vector<36x288xf32>, vector<8x288xf32> -> vector<8x288xf32>
    %c0_42 = arith.constant 0 : index
    %c0_43 = arith.constant 0 : index
    %c0_44 = arith.constant 0 : index
    %30 = vector.load %arg3[%c0_42, %c0_43, %c0_44] : memref<1x8x288xf32, #tpu.memory_space<vmem>>, vector<1x8x288xf32>
    %31 = vector.shape_cast %30 : vector<1x8x288xf32> to vector<8x288xf32>
    %32 = vector.shape_cast %29 : vector<8x288xf32> to vector<1x8x288xf32>
    tpu.vector_store %arg3[%c0_42, %c0_43, %c0_44], %32 {strides = array<i32>} : memref<1x8x288xf32, #tpu.memory_space<vmem>>, vector<1x8x288xf32>,
    %33 = tpu.iota {dimensions = array<i32: 1>} : vector<1x288xi32>
    %c18_i32 = arith.constant 18 : i32
    %c0_i32 = arith.constant 0 : i32
    %34 = arith.cmpi eq, %c18_i32, %c0_i32 : i32
    %c1_i32 = arith.constant 1 : i32
    %35 = arith.select %34, %c1_i32, %c18_i32 : i32
    %36 = vector.broadcast %35 : i32 to vector<1x288xi32>
    %37 = arith.remsi %33, %36 : vector<1x288xi32>
    %c0_i32_45 = arith.constant 0 : i32
    %38 = vector.broadcast %c0_i32_45 : i32 to vector<1x288xi32>
    %39 = arith.cmpi ne, %37, %38 : vector<1x288xi32>
    %c0_i32_46 = arith.constant 0 : i32
    %40 = vector.broadcast %c0_i32_46 : i32 to vector<1x288xi32>
    %41 = arith.cmpi slt, %37, %40 : vector<1x288xi32>
    %c0_i32_47 = arith.constant 0 : i32
    %42 = arith.cmpi slt, %35, %c0_i32_47 : i32
    %43 = vector.broadcast %42 : i1 to vector<1x288xi1>
    %44 = vector.broadcast %43 : vector<1x288xi1> to vector<1x288xi1>
    %45 = arith.xori %41, %44 : vector<1x288xi1>
    %46 = arith.andi %45, %39 : vector<1x288xi1>
    %47 = vector.broadcast %35 : i32 to vector<1x288xi32>
    %48 = arith.addi %37, %47 : vector<1x288xi32>
    %49 = arith.select %46, %48, %37 : vector<1x288xi1>, vector<1x288xi32>
    %c16_i32 = arith.constant 16 : i32
    %50 = vector.broadcast %c16_i32 : i32 to vector<1x288xi32>
    %51 = arith.cmpi slt, %49, %50 : vector<1x288xi32>
    %cst_48 = arith.constant 0.000000e+00 : f32
    %52 = vector.shape_cast %51 : vector<1x288xi1> to vector<1x288xi1>
    %53 = vector.broadcast %52 : vector<1x288xi1> to vector<8x288xi1>
    %54 = vector.broadcast %cst_48 : f32 to vector<8x288xf32>
    %55 = arith.select %53, %29, %54 : vector<8x288xi1>, vector<8x288xf32>
    %cst_49 = arith.constant dense<0.000000e+00> : vector<8xf32>
    %56 = vector.multi_reduction <add>, %55, %cst_49 [1] : vector<8x288xf32> to vector<8xf32>
    %57 = vector.shape_cast %56 : vector<8xf32> to vector<8x1xf32>
    %c0_50 = arith.constant 0 : index
    %c0_51 = arith.constant 0 : index
    %c0_52 = arith.constant 0 : index
    %58 = vector.load %arg4[%c0_50, %c0_51, %c0_52] : memref<1x8x2xf32, #tpu.memory_space<vmem>>, vector<1x8x1xf32>
    %59 = vector.shape_cast %58 : vector<1x8x1xf32> to vector<8x1xf32>
    %60 = vector.shape_cast %57 : vector<8x1xf32> to vector<1x8x1xf32>
    tpu.vector_store %arg4[%c0_50, %c0_51, %c0_52], %60 {strides = array<i32>} : memref<1x8x2xf32, #tpu.memory_space<vmem>>, vector<1x8x1xf32>,
    %61 = arith.mulf %55, %55 : vector<8x288xf32>
    %cst_53 = arith.constant dense<0.000000e+00> : vector<8xf32>
    %62 = vector.multi_reduction <add>, %61, %cst_53 [1] : vector<8x288xf32> to vector<8xf32>
    %63 = vector.shape_cast %62 : vector<8xf32> to vector<8x1xf32>
    %c0_54 = arith.constant 0 : index
    %c0_55 = arith.constant 0 : index
    %c1_56 = arith.constant 1 : index
    %64 = vector.load %arg4[%c0_54, %c0_55, %c1_56] : memref<1x8x2xf32, #tpu.memory_space<vmem>>, vector<1x8x1xf32>
    %65 = vector.shape_cast %64 : vector<1x8x1xf32> to vector<8x1xf32>
    %66 = vector.shape_cast %63 : vector<8x1xf32> to vector<1x8x1xf32>
    tpu.vector_store %arg4[%c0_54, %c0_55, %c1_56], %66 {strides = array<i32>} : memref<1x8x2xf32, #tpu.memory_space<vmem>>, vector<1x8x1xf32>,
    return
  }
  func.func @transform_0(%arg0: i32) -> (i32, i32, i32, i32) {
    %c0_i32 = arith.constant 0 : i32
    %c0_i32_0 = arith.constant 0 : i32
    %c0_i32_1 = arith.constant 0 : i32
    %c0_i32_2 = arith.constant 0 : i32
    return %arg0, %c0_i32, %c0_i32_0, %c0_i32_1 : i32, i32, i32, i32
  }
  func.func @transform_1(%arg0: i32) -> (i32, i32) {
    %c0_i32 = arith.constant 0 : i32
    %c0_i32_0 = arith.constant 0 : i32
    %c0_i32_1 = arith.constant 0 : i32
    return %c0_i32, %c0_i32_0 : i32, i32
  }
  func.func @transform_2(%arg0: i32) -> (i32, i32, i32) {
    %c0_i32 = arith.constant 0 : i32
    %c0_i32_0 = arith.constant 0 : i32
    %c0_i32_1 = arith.constant 0 : i32
    return %arg0, %c0_i32, %c0_i32_0 : i32, i32, i32
  }
  func.func @transform_3(%arg0: i32) -> (i32, i32, i32) {
    %c0_i32 = arith.constant 0 : i32
    %c0_i32_0 = arith.constant 0 : i32
    %c0_i32_1 = arith.constant 0 : i32
    return %arg0, %c0_i32, %c0_i32_0 : i32, i32, i32
  }
}

module attributes {stable_mosaic.version = 11 : i64} {
  func.func @_bn_relu_kernel(%arg0: i32, %arg1: memref<16x288xf32, #tpu.memory_space<vmem>>, %arg2: memref<16x2xf32, #tpu.memory_space<vmem>>, %arg3: memref<16x256xf32, #tpu.memory_space<vmem>>) attributes {dimension_semantics = [#tpu.dimension_semantics<arbitrary>], iteration_bounds = array<i64: 1>, scalar_prefetch = 0 : i64, scratch_operands = 0 : i64, tpu.core_type = #tpu.core_type<tc>, window_params = [{pipeline_mode = #tpu.pipeline_mode<synchronous>, transform_indices = @transform_0, window_bounds = array<i64: 16, 288>}, {pipeline_mode = #tpu.pipeline_mode<synchronous>, transform_indices = @transform_1, window_bounds = array<i64: 16, 2>}, {pipeline_mode = #tpu.pipeline_mode<synchronous>, transform_indices = @transform_2, window_bounds = array<i64: 16, 256>}]} {
    %c0 = arith.constant 0 : index
    %c0_0 = arith.constant 0 : index
    %0 = vector.load %arg1[%c0, %c0_0] : memref<16x288xf32, #tpu.memory_space<vmem>>, vector<16x288xf32>
    %c0_1 = arith.constant 0 : index
    %c0_2 = arith.constant 0 : index
    %1 = vector.load %arg2[%c0_1, %c0_2] : memref<16x2xf32, #tpu.memory_space<vmem>>, vector<16x1xf32>
    %2 = vector.broadcast %1 : vector<16x1xf32> to vector<16x288xf32>
    %3 = arith.mulf %0, %2 : vector<16x288xf32>
    %c0_3 = arith.constant 0 : index
    %c1 = arith.constant 1 : index
    %4 = vector.load %arg2[%c0_3, %c1] : memref<16x2xf32, #tpu.memory_space<vmem>>, vector<16x1xf32>
    %5 = vector.broadcast %4 : vector<16x1xf32> to vector<16x288xf32>
    %6 = arith.addf %3, %5 : vector<16x288xf32>
    %cst = arith.constant 0.000000e+00 : f32
    %7 = vector.broadcast %cst : f32 to vector<16x288xf32>
    %8 = arith.maximumf %6, %7 : vector<16x288xf32>
    %9 = vector.extract_strided_slice %8 {offsets = [0, 0], sizes = [16, 16], strides = [1, 1]} : vector<16x288xf32> to vector<16x16xf32>
    %10 = vector.extract_strided_slice %8 {offsets = [0, 18], sizes = [16, 16], strides = [1, 1]} : vector<16x288xf32> to vector<16x16xf32>
    %11 = vector.extract_strided_slice %8 {offsets = [0, 36], sizes = [16, 16], strides = [1, 1]} : vector<16x288xf32> to vector<16x16xf32>
    %12 = vector.extract_strided_slice %8 {offsets = [0, 54], sizes = [16, 16], strides = [1, 1]} : vector<16x288xf32> to vector<16x16xf32>
    %13 = vector.extract_strided_slice %8 {offsets = [0, 72], sizes = [16, 16], strides = [1, 1]} : vector<16x288xf32> to vector<16x16xf32>
    %14 = vector.extract_strided_slice %8 {offsets = [0, 90], sizes = [16, 16], strides = [1, 1]} : vector<16x288xf32> to vector<16x16xf32>
    %15 = vector.extract_strided_slice %8 {offsets = [0, 108], sizes = [16, 16], strides = [1, 1]} : vector<16x288xf32> to vector<16x16xf32>
    %16 = vector.extract_strided_slice %8 {offsets = [0, 126], sizes = [16, 16], strides = [1, 1]} : vector<16x288xf32> to vector<16x16xf32>
    %17 = vector.extract_strided_slice %8 {offsets = [0, 144], sizes = [16, 16], strides = [1, 1]} : vector<16x288xf32> to vector<16x16xf32>
    %18 = vector.extract_strided_slice %8 {offsets = [0, 162], sizes = [16, 16], strides = [1, 1]} : vector<16x288xf32> to vector<16x16xf32>
    %19 = vector.extract_strided_slice %8 {offsets = [0, 180], sizes = [16, 16], strides = [1, 1]} : vector<16x288xf32> to vector<16x16xf32>
    %20 = vector.extract_strided_slice %8 {offsets = [0, 198], sizes = [16, 16], strides = [1, 1]} : vector<16x288xf32> to vector<16x16xf32>
    %21 = vector.extract_strided_slice %8 {offsets = [0, 216], sizes = [16, 16], strides = [1, 1]} : vector<16x288xf32> to vector<16x16xf32>
    %22 = vector.extract_strided_slice %8 {offsets = [0, 234], sizes = [16, 16], strides = [1, 1]} : vector<16x288xf32> to vector<16x16xf32>
    %23 = vector.extract_strided_slice %8 {offsets = [0, 252], sizes = [16, 16], strides = [1, 1]} : vector<16x288xf32> to vector<16x16xf32>
    %24 = vector.extract_strided_slice %8 {offsets = [0, 270], sizes = [16, 16], strides = [1, 1]} : vector<16x288xf32> to vector<16x16xf32>
    %25 = tpu.concatenate %9, %10, %11, %12, %13, %14, %15, %16, %17, %18, %19, %20, %21, %22, %23, %24 in 1 : vector<16x16xf32>, vector<16x16xf32>, vector<16x16xf32>, vector<16x16xf32>, vector<16x16xf32>, vector<16x16xf32>, vector<16x16xf32>, vector<16x16xf32>, vector<16x16xf32>, vector<16x16xf32>, vector<16x16xf32>, vector<16x16xf32>, vector<16x16xf32>, vector<16x16xf32>, vector<16x16xf32>, vector<16x16xf32> -> vector<16x256xf32>
    %c0_4 = arith.constant 0 : index
    %c0_5 = arith.constant 0 : index
    %26 = vector.load %arg3[%c0_4, %c0_5] : memref<16x256xf32, #tpu.memory_space<vmem>>, vector<16x256xf32>
    tpu.vector_store %arg3[%c0_4, %c0_5], %25 {strides = array<i32>} : memref<16x256xf32, #tpu.memory_space<vmem>>, vector<16x256xf32>,
    return
  }
  func.func @transform_0(%arg0: i32) -> (i32, i32) {
    %c0_i32 = arith.constant 0 : i32
    %c0_i32_0 = arith.constant 0 : i32
    %c0_i32_1 = arith.constant 0 : i32
    return %c0_i32, %c0_i32_0 : i32, i32
  }
  func.func @transform_1(%arg0: i32) -> (i32, i32) {
    %c0_i32 = arith.constant 0 : i32
    %c0_i32_0 = arith.constant 0 : i32
    %c0_i32_1 = arith.constant 0 : i32
    return %c0_i32, %c0_i32_0 : i32, i32
  }
  func.func @transform_2(%arg0: i32) -> (i32, i32) {
    %c0_i32 = arith.constant 0 : i32
    %c0_i32_0 = arith.constant 0 : i32
    %c0_i32_1 = arith.constant 0 : i32
    return %c0_i32, %c0_i32_0 : i32, i32
  }
}

</mosaic_0001>

<llo_original>
// kernel: spatial_view_conv.3
$region0: #{spatial_view_conv.3}
  #allocation0 [shape = 'u32[]', space=smem, size = 0x4, offset = 0x4, fixed_abs, tag = 'smem constant byte address 0x4 - core index']
  #allocation1 [shape = 'u32[144,128]{1,0:T(1,128)}', space=vmem, size = 0x12000, scoped, tag = 'internal scratch']
  %s0 = inlined_call_operand.vmem [shape: f32[16,288], index: 0, kind: input, shape index: {}]
  %s1 = inlined_call_operand.vmem [shape: f32[16,2], index: 1, kind: input, shape index: {}]
  %s2 = inlined_call_operand.vmem [shape: f32[16,256], index: 2, kind: output, shape index: {}]
  %s3 = sld [smem:[#allocation0]]
  $region18: #{spatial_view_conv.3} parent=0
    _
  %s5 = ssub.s32 1, %s3
  %s6 = scalar_select 0, %s5, %s3
  // Predicated region
  $region2: #{spatial_view_conv.3} parent=0 // pred_check
    _
  $region3: #{spatial_view_conv.3} parent=0 // pred_check_branch
    %8 = sbr.rel (0) target = $region5
  $region4: #{spatial_view_conv.3} parent=0 // pred_region
    _
  $region5: #{spatial_view_conv.3} parent=0 // pred_fallthru
    _
  // Predicated region
  $region6: #{spatial_view_conv.3} parent=0 // pred_check
    _
  $region7: #{spatial_view_conv.3} parent=0 // pred_check_branch
    %10 = sbr.rel (0) target = $region9
  $region8: #{spatial_view_conv.3} parent=0 // pred_region
    _
  $region9: #{spatial_view_conv.3} parent=0 // pred_fallthru
    _
  %v11 = vld [vmem:[%s0] sm:$0xff]
  %v12 = vld [vmem:[%s0 + $0x8] sm:$0xff]
  %v13 = vld [vmem:[%s0 + $0x10] sm:$0xff]
  %v14 = vld [vmem:[%s0 + $0x18] sm:$0xff]
  %v15 = vld [vmem:[%s0 + $0x20] sm:$0xff]
  %v16 = vld [vmem:[%s0 + $0x28] sm:$0xff]
  %v17 = vld [vmem:[%s1] sm:$0xff]
  %v18 = vld [vmem:[%s1 + $0x8] sm:$0xff]
  %20 = vset.pattern.permute.xlu0 0
  %21 = vperm.xlu0 %20, %v17
  %v22 = vpop.permute.xlu0 %21
  %25 = vset.pattern.permute.xlu0 0
  %26 = vperm.xlu0 %25, %v18
  %v27 = vpop.permute.xlu0 %26
  %v29 = vmul.f32 %v11, %v22
  %v30 = vmul.f32 %v12, %v22
  %v31 = vmul.f32 %v13, %v22
  %v32 = vmul.f32 %v14, %v27
  %v33 = vmul.f32 %v15, %v27
  %v34 = vmul.f32 %v16, %v27
  %35 = vset.pattern.permute.xlu0 1
  %36 = vperm.xlu0 %35, %v17
  %v37 = vpop.permute.xlu0 %36
  %39 = vset.pattern.permute.xlu0 1
  %40 = vperm.xlu0 %39, %v18
  %v41 = vpop.permute.xlu0 %40
  %v43 = vadd.f32 %v29, %v37
  %v44 = vadd.f32 %v30, %v37
  %v45 = vadd.f32 %v31, %v37
  %v46 = vadd.f32 %v32, %v41
  %v47 = vadd.f32 %v33, %v41
  %v48 = vadd.f32 %v34, %v41
  %v49 = vmax.f32 %v43, 0.0
  %v50 = vmax.f32 %v44, 0.0
  %v51 = vmax.f32 %v45, 0.0
  %v52 = vmax.f32 %v46, 0.0
  %v53 = vmax.f32 %v47, 0.0
  %v54 = vmax.f32 %v48, 0.0
  %57 = vrot.lane.b32.xlu0 %v49, 126
  %v58 = vpop.permute.xlu0 %57
  %59 = vrot.lane.b32.xlu0 %v52, 126
  %v60 = vpop.permute.xlu0 %59
  %63 = vrot.lane.b32.xlu0 %v49, 124
  %v64 = vpop.permute.xlu0 %63
  %65 = vrot.lane.b32.xlu0 %v52, 124
  %v66 = vpop.permute.xlu0 %65
  %69 = vrot.lane.b32.xlu0 %v49, 122
  %v70 = vpop.permute.xlu0 %69
  %71 = vrot.lane.b32.xlu0 %v52, 122
  %v72 = vpop.permute.xlu0 %71
  %75 = vrot.lane.b32.xlu0 %v49, 120
  %v76 = vpop.permute.xlu0 %75
  %77 = vrot.lane.b32.xlu0 %v52, 120
  %v78 = vpop.permute.xlu0 %77
  %81 = vrot.lane.b32.xlu0 %v49, 118
  %v82 = vpop.permute.xlu0 %81
  %83 = vrot.lane.b32.xlu0 %v52, 118
  %v84 = vpop.permute.xlu0 %83
  %87 = vrot.lane.b32.xlu0 %v49, 116
  %v88 = vpop.permute.xlu0 %87
  %89 = vrot.lane.b32.xlu0 %v52, 116
  %v90 = vpop.permute.xlu0 %89
  %95 = vrot.lane.b32.xlu0 %v49, 114
  %v96 = vpop.permute.xlu0 %95
  %97 = vrot.lane.b32.xlu0 %v50, 114
  %v98 = vpop.permute.xlu0 %97
  %99 = vrot.lane.b32.xlu0 %v52, 114
  %v100 = vpop.permute.xlu0 %99
  %101 = vrot.lane.b32.xlu0 %v53, 114
  %v102 = vpop.permute.xlu0 %101
  %vm103 = vcmask 932864
  %v104 = vsel %vm103, %v96, %v98
  %v105 = vsel %vm103, %v100, %v102
  %108 = vrot.lane.b32.xlu0 %v50, 112
  %v109 = vpop.permute.xlu0 %108
  %110 = vrot.lane.b32.xlu0 %v53, 112
  %v111 = vpop.permute.xlu0 %110
  %114 = vrot.lane.b32.xlu0 %v50, 110
  %v115 = vpop.permute.xlu0 %114
  %116 = vrot.lane.b32.xlu0 %v53, 110
  %v117 = vpop.permute.xlu0 %116
  %120 = vrot.lane.b32.xlu0 %v50, 108
  %v121 = vpop.permute.xlu0 %120
  %122 = vrot.lane.b32.xlu0 %v53, 108
  %v123 = vpop.permute.xlu0 %122
  %126 = vrot.lane.b32.xlu0 %v50, 106
  %v127 = vpop.permute.xlu0 %126
  %128 = vrot.lane.b32.xlu0 %v53, 106
  %v129 = vpop.permute.xlu0 %128
  %132 = vrot.lane.b32.xlu0 %v50, 104
  %v133 = vpop.permute.xlu0 %132
  %134 = vrot.lane.b32.xlu0 %v53, 104
  %v135 = vpop.permute.xlu0 %134
  %138 = vrot.lane.b32.xlu0 %v50, 102
  %v139 = vpop.permute.xlu0 %138
  %140 = vrot.lane.b32.xlu0 %v53, 102
  %v141 = vpop.permute.xlu0 %140
  %146 = vrot.lane.b32.xlu0 %v50, 100
  %v147 = vpop.permute.xlu0 %146
  %148 = vrot.lane.b32.xlu0 %v51, 100
  %v149 = vpop.permute.xlu0 %148
  %150 = vrot.lane.b32.xlu0 %v53, 100
  %v151 = vpop.permute.xlu0 %150
  %152 = vrot.lane.b32.xlu0 %v54, 100
  %v153 = vpop.permute.xlu0 %152
  %vm154 = vcmask 818176
  %v155 = vsel %vm154, %v147, %v149
  %v156 = vsel %vm154, %v151, %v153
  %159 = vrot.lane.b32.xlu0 %v51, 98
  %v160 = vpop.permute.xlu0 %159
  %161 = vrot.lane.b32.xlu0 %v54, 98
  %v162 = vpop.permute.xlu0 %161
  %vm165 = vcmask 130048
  %v166 = vsel %vm165, %v49, %v58
  %v167 = vsel %vm165, %v52, %v60
  %vm168 = vcmask 261120
  %v169 = vsel %vm168, %v166, %v64
  %v170 = vsel %vm168, %v167, %v66
  %vm171 = vcmask 392192
  %v172 = vsel %vm171, %v169, %v70
  %v173 = vsel %vm171, %v170, %v72
  %vm174 = vcmask 523264
  %v175 = vsel %vm174, %v172, %v76
  %v176 = vsel %vm174, %v173, %v78
  %vm177 = vcmask 654336
  %v178 = vsel %vm177, %v175, %v82
  %v179 = vsel %vm177, %v176, %v84
  %vm180 = vcmask 785408
  %v181 = vsel %vm180, %v178, %v88
  %v182 = vsel %vm180, %v179, %v90
  %vm183 = vcmask 916480
  %v184 = vsel %vm183, %v181, %v104
  %v185 = vsel %vm183, %v182, %v105
  %v186 = vsel %vm165, %v109, %v115
  %v187 = vsel %vm165, %v111, %v117
  %v188 = vsel %vm168, %v186, %v121
  %v189 = vsel %vm168, %v187, %v123
  %v190 = vsel %vm171, %v188, %v127
  %v191 = vsel %vm171, %v189, %v129
  %v192 = vsel %vm174, %v190, %v133
  %v193 = vsel %vm174, %v191, %v135
  %v194 = vsel %vm177, %v192, %v139
  %v195 = vsel %vm177, %v193, %v141
  %v196 = vsel %vm180, %v194, %v155
  %v197 = vsel %vm180, %v195, %v156
  %v198 = vsel %vm183, %v196, %v160
  %v199 = vsel %vm183, %v197, %v162
  %200 = vst [vmem:[%s2] sm:$0xff] %v184
  %201 = vst [vmem:[%s2 + $0x8] sm:$0xff] %v198
  %202 = vst [vmem:[%s2 + $0x10] sm:$0xff] %v185
  %203 = vst [vmem:[%s2 + $0x18] sm:$0xff] %v199
  // Predicated region
  $region10: #{spatial_view_conv.3} parent=0 // pred_check
    _
  $region11: #{spatial_view_conv.3} parent=0 // pred_check_branch
    %205 = sbr.rel (0) target = $region13
  $region12: #{spatial_view_conv.3} parent=0 // pred_region
    _
  $region13: #{spatial_view_conv.3} parent=0 // pred_fallthru
    _
  // Predicated region
  $region14: #{spatial_view_conv.3} parent=0 // pred_check
    _
  $region15: #{spatial_view_conv.3} parent=0 // pred_check_branch
    %207 = sbr.rel (0) target = $region17
  $region16: #{spatial_view_conv.3} parent=0 // pred_region
    _
  $region17: #{spatial_view_conv.3} parent=0 // pred_fallthru
    _

// kernel: spatial_view_conv.2
$region0: #{spatial_view_conv.2}
  #allocation0 [shape = 'u32[]', space=smem, size = 0x4, offset = 0x4, fixed_abs, tag = 'smem constant byte address 0x4 - core index']
  #allocation1 [shape = 'u32[144,128]{1,0:T(1,128)}', space=vmem, size = 0x12000, scoped, tag = 'internal scratch']
  #allocation2 [shape = 'f32[36,288]{1,0:T(8,128)}', space=vmem, size = 0xf000, scoped, tag = 'scratch operand']
  %s0 = inlined_call_operand.vmem [shape: f32[2,1,4,342], index: 0, kind: input, shape index: {}]
  %s1 = inlined_call_operand.vmem [shape: f32[8,36], index: 1, kind: input, shape index: {}]
  %s2 = inlined_call_operand.vmem [shape: f32[2,8,288], index: 2, kind: output, shape index: {0}]
  %s3 = inlined_call_operand.vmem [shape: f32[2,8,2], index: 3, kind: output, shape index: {1}]
  %4 = xla_tuple %s2, %s3
  %s5 = sld [smem:[#allocation0]]
  $region49: #{spatial_view_conv.2} parent=0
    _
  %s7 = ssub.s32 1, %s5
  %s8 = scalar_select 0, %s7, %s5
  loop: start=0, step=1, limit=4
  $region2: #{spatial_view_conv.2} parent=0 // loop_pre_header
    _
  $region3: #{spatial_view_conv.2} parent=0 // loop_header
    %s10 = sphi 0, %s14
    %p11 = scmp.ge.s32.totalorder %s10, 4
    %s20 = sphi 0, %s22
    %s23 = sphi 0, %s20
    %s24 = sphi 0, %s23
    %s40 = sphi 0, %s24
    %s44 = sphi 0, %s44
    %s46 = sphi 0, %s44
    %s47 = sphi 0, %s46
    %s61 = sphi 0, %s47
    %s67 = sphi 0, %s69
    %s70 = sphi 0, %s67
    %s71 = sphi 0, %s70
    %s87 = sphi 0, %s71
    %s93 = sphi 0, %s95
    %s96 = sphi 0, %s93
    %s97 = sphi 0, %s96
    %s113 = sphi 0, %s97
  $region4: #{spatial_view_conv.2} parent=0 // loop_header_branch
    %13 = sbr.rel (%p11) target = $region8
  $region5: #{spatial_view_conv.2} parent=0 // loop_body
    %s15 = ssub.s32 %s10, 1
    %s16 = ssub.s32 %s10, 2
    %s17 = sadd.s32 %s10, 1
    %s18 = ssub.s32 %s10, %s17
    %p19 = scmp.eq.s32.totalorder %s18, 0
    %s21 = sadd.s32 %s20, 1
    %s22 = scalar_select %p19, %s20, %s21
    %p25 = pneg %p19
    %p26 = scmp.eq.s32.totalorder %s10, 1
    %p27 = por %p25, %p26
    %p28 = scmp.ne.s32.totalorder %s20, %s23
    %p29 = scmp.eq.s32.totalorder %s10, 0
    %p30 = por %p28, %p29
    %p31 = scmp.ne.s32.totalorder %s20, %s23
    %p32 = scmp.eq.s32.totalorder %s15, 1
    %p33 = por %p31, %p32
    %p34 = scmp.ne.s32.totalorder %s23, %s24
    %p35 = scmp.eq.s32.totalorder %s15, 0
    %p36 = por %p34, %p35
    %p37 = scmp.ne.s32.totalorder %s23, %s24
    %p38 = scmp.eq.s32.totalorder %s16, 1
    %p39 = por %p37, %p38
    %p41 = scmp.ne.s32.totalorder %s24, %s40
    %p42 = scmp.eq.s32.totalorder %s16, 0
    %p43 = por %p41, %p42
    %s45 = sadd.s32 %s44, 1
    %p48 = scmp.eq.s32.totalorder %s10, 1
    %p49 = scmp.ne.s32.totalorder %s44, %s46
    %p50 = scmp.eq.s32.totalorder %s10, 0
    %p51 = por %p49, %p50
    %p52 = scmp.ne.s32.totalorder %s44, %s46
    %p53 = scmp.eq.s32.totalorder %s15, 1
    %p54 = por %p52, %p53
    %p55 = scmp.ne.s32.totalorder %s46, %s47
    %p56 = scmp.eq.s32.totalorder %s15, 0
    %p57 = por %p55, %p56
    %p58 = scmp.ne.s32.totalorder %s46, %s47
    %p59 = scmp.eq.s32.totalorder %s16, 1
    %p60 = por %p58, %p59
    %p62 = scmp.ne.s32.totalorder %s47, %s61
    %p63 = scmp.eq.s32.totalorder %s16, 0
    %p64 = por %p62, %p63
    %s65 = ssub.s32 %s10, %s17
    %p66 = scmp.eq.s32.totalorder %s65, 0
    %s68 = sadd.s32 %s67, 1
    %s69 = scalar_select %p66, %s67, %s68
    %p72 = pneg %p66
    %p73 = scmp.eq.s32.totalorder %s10, 1
    %p74 = por %p72, %p73
    %p75 = scmp.ne.s32.totalorder %s67, %s70
    %p76 = scmp.eq.s32.totalorder %s10, 0
    %p77 = por %p75, %p76
    %p78 = scmp.ne.s32.totalorder %s67, %s70
    %p79 = scmp.eq.s32.totalorder %s15, 1
    %p80 = por %p78, %p79
    %p81 = scmp.ne.s32.totalorder %s70, %s71
    %p82 = scmp.eq.s32.totalorder %s15, 0
    %p83 = por %p81, %p82
    %p84 = scmp.ne.s32.totalorder %s70, %s71
    %p85 = scmp.eq.s32.totalorder %s16, 1
    %p86 = por %p84, %p85
    %p88 = scmp.ne.s32.totalorder %s71, %s87
    %p89 = scmp.eq.s32.totalorder %s16, 0
    %p90 = por %p88, %p89
    %s91 = ssub.s32 %s10, %s17
    %p92 = scmp.eq.s32.totalorder %s91, 0
    %s94 = sadd.s32 %s93, 1
    %s95 = scalar_select %p92, %s93, %s94
    %p98 = pneg %p92
    %p99 = scmp.eq.s32.totalorder %s10, 1
    %p100 = por %p98, %p99
    %p101 = scmp.ne.s32.totalorder %s93, %s96
    %p102 = scmp.eq.s32.totalorder %s10, 0
    %p103 = por %p101, %p102
    %p104 = scmp.ne.s32.totalorder %s93, %s96
    %p105 = scmp.eq.s32.totalorder %s15, 1
    %p106 = por %p104, %p105
    %p107 = scmp.ne.s32.totalorder %s96, %s97
    %p108 = scmp.eq.s32.totalorder %s15, 0
    %p109 = por %p107, %p108
    %p110 = scmp.ne.s32.totalorder %s96, %s97
    %p111 = scmp.eq.s32.totalorder %s16, 1
    %p112 = por %p110, %p111
    %p114 = scmp.ne.s32.totalorder %s97, %s113
    %p115 = scmp.eq.s32.totalorder %s16, 0
    %p116 = por %p114, %p115
    %p117 = scmp.le.s32.totalorder 1, %s10
    %p118 = scmp.lt.s32.totalorder %s10, 3
    %p119 = pnand %p117, %p118
    %p120 = pneg %p119
    // Predicated region
    $region9: #{spatial_view_conv.2} parent=5 // pred_check
      _
    $region10: #{spatial_view_conv.2} parent=5 // pred_check_branch
      %122 = sbr.rel (%p119) target = $region12
    $region11: #{spatial_view_conv.2} parent=5 // pred_region
      %s123 = ssub.s32 %s10, 1
      // Predicated region
      $region13: #{spatial_view_conv.2} parent=11 // pred_check
        %p124 = pneg %p57
      $region14: #{spatial_view_conv.2} parent=11 // pred_check_branch
        %126 = sbr.rel (%p124) target = $region16
      $region15: #{spatial_view_conv.2} parent=11 // pred_region
        _
      $region16: #{spatial_view_conv.2} parent=11 // pred_fallthru
        _
    $region12: #{spatial_view_conv.2} parent=5 // pred_fallthru
      _
    %p127 = scmp.lt.s32.totalorder %s10, 2
    // Predicated region
    $region17: #{spatial_view_conv.2} parent=5 // pred_check
      %p128 = pneg %p127
    $region18: #{spatial_view_conv.2} parent=5 // pred_check_branch
      %130 = sbr.rel (%p128) target = $region20
    $region19: #{spatial_view_conv.2} parent=5 // pred_region
      // Predicated region
      $region21: #{spatial_view_conv.2} parent=19 // pred_check
        %p131 = pneg %p30
      $region22: #{spatial_view_conv.2} parent=19 // pred_check_branch
        %133 = sbr.rel (%p131) target = $region24
      $region23: #{spatial_view_conv.2} parent=19 // pred_region
        %p134 = scmp.lt.s32.totalorder %s10, 1
        %s135 = scalar_select %p134, %s10, 1
        %s136 = smul.addr %s135, 3
        %s137 = smul.addr %s136, 4
        %s138 = scalar_lea.vmem %s0, %s137
      $region24: #{spatial_view_conv.2} parent=19 // pred_fallthru
        _
    $region20: #{spatial_view_conv.2} parent=5 // pred_fallthru
      _
    %p139 = scmp.le.s32.totalorder 1, %s10
    %p140 = scmp.lt.s32.totalorder %s10, 3
    %p141 = pnand %p139, %p140
    %p142 = pneg %p141
    // Predicated region
    $region25: #{spatial_view_conv.2} parent=5 // pred_check
      _
    $region26: #{spatial_view_conv.2} parent=5 // pred_check_branch
      %144 = sbr.rel (%p141) target = $region28
    $region27: #{spatial_view_conv.2} parent=5 // pred_region
      %s145 = ssub.s32 %s10, 1
      %p146 = scmp.lt.s32.totalorder %s15, 1
      %s147 = scalar_select %p146, %s15, 1
      %s148 = smul.addr %s147, 3
      %s149 = smul.addr %s148, 4
      %s150 = scalar_lea.vmem %s0, %s149
      %p151 = pneg %p36
      %p152 = pneg %p33
      %p153 = pneg %p57
      %p154 = pneg %p54
      %p155 = pneg %p83
      %p156 = pneg %p80
      %p157 = scmp.lt.s32.totalorder %s15, 1
      %s158 = scalar_select %p157, %s15, 1
      %s159 = smul.addr %s158, 3
      %s160 = smul.addr %s159, 8
      %s161 = scalar_lea.vmem %s2, %s160
      %p162 = pneg %p109
      %p163 = pneg %p106
      %p164 = scmp.lt.s32.totalorder %s15, 1
      %s165 = scalar_select %p164, %s15, 1
      %s166 = smul.addr %s165, 8
      %s167 = scalar_lea.vmem %s3, %s166
      %p168 = scmp.lt.s32.totalorder %s15, 1
      %s169 = scalar_select %p168, %s15, 1
      %s170 = smul.addr %s169, 3
      %s171 = smul.addr %s170, 4
      %s172 = scalar_lea.vmem %s0, %s171
      %p173 = scmp.lt.s32.totalorder %s15, 1
      %s174 = scalar_select %p173, %s15, 1
      %s175 = smul.addr %s174, 3
      %s176 = smul.addr %s175, 8
      %s177 = scalar_lea.vmem %s2, %s176
      %p178 = scmp.lt.s32.totalorder %s15, 1
      %s179 = scalar_select %p178, %s15, 1
      %s180 = smul.addr %s179, 8
      %s181 = scalar_lea.vmem %s3, %s180
      %v182 = vld [vmem:[%s172] sm:$0xff]
      %v183 = vld [vmem:[%s172 + $0x8] sm:$0xf]
      %v185 = vcombine.high %v182, %v182
      %187 = vst [vmem:[#allocation2] sm:$0xf] %v182
      %188 = vst [vmem:[#allocation2 + $0x8] sm:$0xf] %v185
      %vm189 = vcmask 257024
      %190 = vst.msk [vmem:[#allocation2 + $0x10] sm:$0xf] %vm189, %v183
      %v191 = vld [vmem:[%s172] sm:$0xff]
      %v192 = vld [vmem:[%s172 + $0x8] sm:$0xf]
      %v195 = vcombine.low %v191, %v191
      %v196 = vcombine.low %v192, %v192
      %197 = vrot.lane.b32.xlu0 %v195, 127
      %v198 = vpop.permute.xlu0 %197
      %199 = vrot.lane.b32.xlu0 %v191, 127
      %v200 = vpop.permute.xlu0 %199
      %201 = vrot.lane.b32.xlu0 %v196, 127
      %v202 = vpop.permute.xlu0 %201
      %vm203 = vcmask 1039360
      %v204 = vsel %vm203, %v198, %v200
      %v205 = vsel %vm203, %v200, %v202
      %209 = vst [vmem:[#allocation2] sm:$0xf0] %v204
      %210 = vst [vmem:[#allocation2 + $0x8] sm:$0xf0] %v205
      %vm211 = vcmask 261124
      %212 = vst.msk [vmem:[#allocation2 + $0x10] sm:$0xf0] %vm211, %v202
      %v213 = vld [vmem:[%s172] sm:$0xff]
      %v214 = vld [vmem:[%s172 + $0x8] sm:$0xf]
      %v217 = vcombine.high %v213, %v213
      %218 = vrot.lane.b32.xlu0 %v213, 126
      %v219 = vpop.permute.xlu0 %218
      %220 = vrot.lane.b32.xlu0 %v217, 126
      %v221 = vpop.permute.xlu0 %220
      %222 = vrot.lane.b32.xlu0 %v214, 126
      %v223 = vpop.permute.xlu0 %222
      %vm224 = vcmask 1031168
      %v225 = vsel %vm224, %v219, %v221
      %v226 = vsel %vm224, %v221, %v223
      %230 = vst [vmem:[#allocation2 + $0x18] sm:$0xf] %v225
      %231 = vst [vmem:[#allocation2 + $0x20] sm:$0xf] %v226
      %232 = vst.msk [vmem:[#allocation2 + $0x28] sm:$0xf] %vm189, %v223
      %v233 = vld [vmem:[%s172] sm:$0xff]
      %v234 = vld [vmem:[%s172 + $0x8] sm:$0xf]
      %v237 = vcombine.low %v233, %v233
      %v238 = vcombine.low %v234, %v234
      %239 = vrot.lane.b32.xlu0 %v237, 110
      %v240 = vpop.permute.xlu0 %239
      %241 = vrot.lane.b32.xlu0 %v233, 110
      %v242 = vpop.permute.xlu0 %241
      %243 = vrot.lane.b32.xlu0 %v238, 110
      %v244 = vpop.permute.xlu0 %243
      %vm245 = vcmask 900096
      %v246 = vsel %vm245, %v240, %v242
      %v247 = vsel %vm245, %v242, %v244
      %251 = vst [vmem:[#allocation2 + $0x18] sm:$0xf0] %v246
      %252 = vst [vmem:[#allocation2 + $0x20] sm:$0xf0] %v247
      %253 = vst.msk [vmem:[#allocation2 + $0x28] sm:$0xf0] %vm211, %v244
      %v254 = vld [vmem:[%s172] sm:$0xff]
      %v255 = vld [vmem:[%s172 + $0x8] sm:$0xf]
      %v258 = vcombine.high %v254, %v254
      %259 = vrot.lane.b32.xlu0 %v254, 109
      %v260 = vpop.permute.xlu0 %259
      %261 = vrot.lane.b32.xlu0 %v258, 109
      %v262 = vpop.permute.xlu0 %261
      %263 = vrot.lane.b32.xlu0 %v255, 109
      %v264 = vpop.permute.xlu0 %263
      %vm265 = vcmask 891904
      %v266 = vsel %vm265, %v260, %v262
      %v267 = vsel %vm265, %v262, %v264
      %271 = vst [vmem:[#allocation2 + $0x30] sm:$0xf] %v266
      %272 = vst [vmem:[#allocation2 + $0x38] sm:$0xf] %v267
      %273 = vst.msk [vmem:[#allocation2 + $0x40] sm:$0xf] %vm189, %v264
      %v274 = vld [vmem:[%s172] sm:$0xff]
      %v275 = vld [vmem:[%s172 + $0x8] sm:$0xf]
      %v278 = vcombine.low %v274, %v274
      %v279 = vcombine.low %v275, %v275
      %280 = vrot.lane.b32.xlu0 %v278, 108
      %v281 = vpop.permute.xlu0 %280
      %282 = vrot.lane.b32.xlu0 %v274, 108
      %v283 = vpop.permute.xlu0 %282
      %284 = vrot.lane.b32.xlu0 %v279, 108
      %v285 = vpop.permute.xlu0 %284
      %vm286 = vcmask 883712
      %v287 = vsel %vm286, %v281, %v283
      %v288 = vsel %vm286, %v283, %v285
      %292 = vst [vmem:[#allocation2 + $0x30] sm:$0xf0] %v287
      %293 = vst [vmem:[#allocation2 + $0x38] sm:$0xf0] %v288
      %294 = vst.msk [vmem:[#allocation2 + $0x40] sm:$0xf0] %vm211, %v285
      %v295 = vld [vmem:[%s172] sm:$0xff]
      %v296 = vld [vmem:[%s172 + $0x8] sm:$0xf]
      %v299 = vcombine.high %v295, %v295
      %300 = vrot.lane.b32.xlu0 %v295, 92
      %v301 = vpop.permute.xlu0 %300
      %302 = vrot.lane.b32.xlu0 %v299, 92
      %v303 = vpop.permute.xlu0 %302
      %304 = vrot.lane.b32.xlu0 %v296, 92
      %v305 = vpop.permute.xlu0 %304
      %vm306 = vcmask 752640
      %v307 = vsel %vm306, %v301, %v303
      %v308 = vsel %vm306, %v303, %v305
      %312 = vst [vmem:[#allocation2 + $0x48] sm:$0xf] %v307
      %313 = vst [vmem:[#allocation2 + $0x50] sm:$0xf] %v308
      %314 = vst.msk [vmem:[#allocation2 + $0x58] sm:$0xf] %vm189, %v305
      %v315 = vld [vmem:[%s172] sm:$0xff]
      %v316 = vld [vmem:[%s172 + $0x8] sm:$0xf]
      %v319 = vcombine.low %v315, %v315
      %v320 = vcombine.low %v316, %v316
      %321 = vrot.lane.b32.xlu0 %v319, 91
      %v322 = vpop.permute.xlu0 %321
      %323 = vrot.lane.b32.xlu0 %v315, 91
      %v324 = vpop.permute.xlu0 %323
      %325 = vrot.lane.b32.xlu0 %v320, 91
      %v326 = vpop.permute.xlu0 %325
      %vm327 = vcmask 744448
      %v328 = vsel %vm327, %v322, %v324
      %v329 = vsel %vm327, %v324, %v326
      %333 = vst [vmem:[#allocation2 + $0x48] sm:$0xf0] %v328
      %334 = vst [vmem:[#allocation2 + $0x50] sm:$0xf0] %v329
      %335 = vst.msk [vmem:[#allocation2 + $0x58] sm:$0xf0] %vm211, %v326
      %v336 = vld [vmem:[%s172] sm:$0xff]
      %v337 = vld [vmem:[%s172 + $0x8] sm:$0xf]
      %v340 = vcombine.high %v336, %v336
      %341 = vrot.lane.b32.xlu0 %v336, 90
      %v342 = vpop.permute.xlu0 %341
      %343 = vrot.lane.b32.xlu0 %v340, 90
      %v344 = vpop.permute.xlu0 %343
      %345 = vrot.lane.b32.xlu0 %v337, 90
      %v346 = vpop.permute.xlu0 %345
      %vm347 = vcmask 736256
      %v348 = vsel %vm347, %v342, %v344
      %v349 = vsel %vm347, %v344, %v346
      %353 = vst [vmem:[#allocation2 + $0x60] sm:$0xf] %v348
      %354 = vst [vmem:[#allocation2 + $0x68] sm:$0xf] %v349
      %355 = vst.msk [vmem:[#allocation2 + $0x70] sm:$0xf] %vm189, %v346
      %v356 = vld [vmem:[%s1] sm:$0xff]
      %v357 = vld [vmem:[#allocation2] sm:$0xff]
      %v358 = vld [vmem:[#allocation2 + $0x8] sm:$0xff]
      %v359 = vld [vmem:[#allocation2 + $0x10] sm:$0xff]
      %v360 = vld [vmem:[#allocation2 + $0x18] sm:$0xff]
      %v361 = vld [vmem:[#allocation2 + $0x20] sm:$0xff]
      %v362 = vld [vmem:[#allocation2 + $0x28] sm:$0xff]
      %v363 = vld [vmem:[#allocation2 + $0x30] sm:$0xff]
      %v364 = vld [vmem:[#allocation2 + $0x38] sm:$0xff]
      %v365 = vld [vmem:[#allocation2 + $0x40] sm:$0xff]
      %v366 = vld [vmem:[#allocation2 + $0x48] sm:$0xff]
      %v367 = vld [vmem:[#allocation2 + $0x50] sm:$0xff]
      %v368 = vld [vmem:[#allocation2 + $0x58] sm:$0xff]
      %v369 = vld [vmem:[#allocation2 + $0x60] sm:$0xf]
      %v370 = vld [vmem:[#allocation2 + $0x68] sm:$0xf]
      %v371 = vld [vmem:[#allocation2 + $0x70] sm:$0xf]
      %vm372 = vcmask 293888
      %v374 = vsel %vm372, %v356, 0
      %vm376 = vcmask 1043456
      %v378 = vsel %vm376, %v369, 0
      %v381 = vsel %vm376, %v370, 0
      %v384 = vsel %vm376, %v371, 0
      %386 = vmatprep.subr.mxu0 %v358
      %387 = vmatpush1.msra.mxu0 %v357
      %388 = vmatprep.subr.mxu0 %v361
      %389 = vmatpush1.msra.mxu0 %v360
      %390 = vmatprep.subr.mxu0 %v364
      %391 = vmatpush1.msra.mxu0 %v363
      %392 = vmatprep.subr.mxu0 %v367
      %393 = vmatpush1.msra.mxu0 %v366
      %394 = vmatprep.subr.mxu0 %v381
      %395 = vmatpush1.msra.mxu0 %v378
      %396 = vmatprep.subr.mxu0 0.0
      %397 = vmatpush1.msra.mxu0 0.0
      %398 = vmatprep.subr.mxu0 0.0
      %399 = vmatpush1.msra.mxu0 0.0
      %400 = vmatprep.subr.mxu0 0.0
      %401 = vmatpush1.msra.mxu0 0.0
      %402 = vmatprep.subr.mxu0 0.0
      %403 = vmatpush1.msra.mxu0 0.0
      %404 = vmatprep.subr.mxu0 0.0
      %405 = vmatpush1.msra.mxu0 0.0
      %406 = vmatprep.subr.mxu0 0.0
      %407 = vmatpush1.msra.mxu0 0.0
      %408 = vmatprep.subr.mxu0 0.0
      %409 = vmatpush1.msra.mxu0 0.0
      %410 = vmatprep.subr.mxu0 0.0
      %411 = vmatpush1.msra.mxu0 0.0
      %412 = vmatprep.subr.mxu0 0.0
      %413 = vmatpush1.msra.mxu0 0.0
      %414 = vmatprep.subr.mxu0 0.0
      %415 = vmatpush1.msra.mxu0 0.0
      %416 = vmatprep.subr.mxu0 0.0
      %417 = vmatpush1.msra.mxu0 0.0
      %418 = vmatprep.subr.mxu0 0.0
      %419 = vmatpush1.msra.mxu0 0.0
      %420 = vmatprep.subr.mxu0 0.0
      %421 = vmatpush1.msra.mxu0 0.0
      %422 = vmatprep.subr.mxu0 0.0
      %423 = vmatpush1.msra.mxu0 0.0
      %424 = vmatprep.subr.mxu0 0.0
      %425 = vmatpush1.msra.mxu0 0.0
      %426 = vmatprep.subr.mxu0 0.0
      %427 = vmatpush1.msra.mxu0 0.0
      %428 = vmatprep.subr.mxu0 0.0
      %429 = vmatpush1.msra.mxu0 0.0
      %430 = vmatprep.subr.mxu0 0.0
      %431 = vmatpush1.msra.mxu0 0.0
      %432 = vmatprep.subr.mxu0 0.0
      %433 = vmatpush1.msra.mxu0 0.0
      %434 = vmatprep.subr.mxu0 0.0
      %435 = vmatpush1.msra.mxu0 0.0
      %436 = vmatprep.subr.mxu0 0.0
      %437 = vmatpush1.msra.mxu0 0.0
      %438 = vmatprep.subr.mxu0 0.0
      %439 = vmatpush1.msra.mxu0 0.0
      %440 = vmatprep.subr.mxu0 0.0
      %441 = vmatpush1.msra.mxu0 0.0
      %442 = vmatprep.subr.mxu0 0.0
      %443 = vmatpush1.msra.mxu0 0.0
      %444 = vmatprep.subr.mxu0 0.0
      %445 = vmatpush1.msra.mxu0 0.0
      %446 = vmatprep.subr.mxu0 0.0
      %447 = vmatpush1.msra.mxu0 0.0
      %448 = vmatprep.subr.mxu0 0.0
      %449 = vmatpush1.msra.mxu0 0.0
      %450 = vmatprep.mubr.f32.mxu0 0.0
      %451 = vmatmul.mubr.f32.gmra.mrb[0].mxu0 %v374
      %v452 = vpop.f32.mrb[0].mxu0
      %v453 = vadd.f32 0.0, %v452
      %v454 = vpop.f32.mrb[0].mxu0
      %v455 = vadd.f32 0.0, %v454
      %456 = vdwg.mxu0
      %457 = vmatprep.subr.mxu0 0.0
      %458 = vmatpush1.msra.mxu0 %v359
      %459 = vmatprep.subr.mxu0 0.0
      %460 = vmatpush1.msra.mxu0 %v362
      %461 = vmatprep.subr.mxu0 0.0
      %462 = vmatpush1.msra.mxu0 %v365
      %463 = vmatprep.subr.mxu0 0.0
      %464 = vmatpush1.msra.mxu0 %v368
      %465 = vmatprep.subr.mxu0 0.0
      %466 = vmatpush1.msra.mxu0 %v384
      %467 = vmatprep.subr.mxu0 0.0
      %468 = vmatpush1.msra.mxu0 0.0
      %469 = vmatprep.subr.mxu0 0.0
      %470 = vmatpush1.msra.mxu0 0.0
      %471 = vmatprep.subr.mxu0 0.0
      %472 = vmatpush1.msra.mxu0 0.0
      %473 = vmatprep.subr.mxu0 0.0
      %474 = vmatpush1.msra.mxu0 0.0
      %475 = vmatprep.subr.mxu0 0.0
      %476 = vmatpush1.msra.mxu0 0.0
      %477 = vmatprep.subr.mxu0 0.0
      %478 = vmatpush1.msra.mxu0 0.0
      %479 = vmatprep.subr.mxu0 0.0
      %480 = vmatpush1.msra.mxu0 0.0
      %481 = vmatprep.subr.mxu0 0.0
      %482 = vmatpush1.msra.mxu0 0.0
      %483 = vmatprep.subr.mxu0 0.0
      %484 = vmatpush1.msra.mxu0 0.0
      %485 = vmatprep.subr.mxu0 0.0
      %486 = vmatpush1.msra.mxu0 0.0
      %487 = vmatprep.subr.mxu0 0.0
      %488 = vmatpush1.msra.mxu0 0.0
      %489 = vmatprep.subr.mxu0 0.0
      %490 = vmatpush1.msra.mxu0 0.0
      %491 = vmatprep.subr.mxu0 0.0
      %492 = vmatpush1.msra.mxu0 0.0
      %493 = vmatprep.subr.mxu0 0.0
      %494 = vmatpush1.msra.mxu0 0.0
      %495 = vmatprep.subr.mxu0 0.0
      %496 = vmatpush1.msra.mxu0 0.0
      %497 = vmatprep.subr.mxu0 0.0
      %498 = vmatpush1.msra.mxu0 0.0
      %499 = vmatprep.subr.mxu0 0.0
      %500 = vmatpush1.msra.mxu0 0.0
      %501 = vmatprep.subr.mxu0 0.0
      %502 = vmatpush1.msra.mxu0 0.0
      %503 = vmatprep.subr.mxu0 0.0
      %504 = vmatpush1.msra.mxu0 0.0
      %505 = vmatprep.subr.mxu0 0.0
      %506 = vmatpush1.msra.mxu0 0.0
      %507 = vmatprep.subr.mxu0 0.0
      %508 = vmatpush1.msra.mxu0 0.0
      %509 = vmatprep.subr.mxu0 0.0
      %510 = vmatpush1.msra.mxu0 0.0
      %511 = vmatprep.subr.mxu0 0.0
      %512 = vmatpush1.msra.mxu0 0.0
      %513 = vmatprep.subr.mxu0 0.0
      %514 = vmatpush1.msra.mxu0 0.0
      %515 = vmatprep.subr.mxu0 0.0
      %516 = vmatpush1.msra.mxu0 0.0
      %517 = vmatprep.subr.mxu0 0.0
      %518 = vmatpush1.msra.mxu0 0.0
      %519 = vmatprep.subr.mxu0 0.0
      %520 = vmatpush1.msra.mxu0 0.0
      %521 = vmatprep.mubr.f32.mxu0 0.0
      %522 = vmatmul.mubr.f32.gmra.mrb[0].mxu0 %v374
      %v523 = vpop.f32.mrb[0].mxu0
      %v524 = vadd.f32 0.0, %v523
      %v525 = vpop.f32.mrb[0].mxu0
      %526 = vdwg.mxu0
      %527 = vst [vmem:[%s177] sm:$0xff] %v453
      %528 = vst [vmem:[%s177 + $0x8] sm:$0xff] %v455
      %vm529 = vcmask 261120
      %530 = vst.msk [vmem:[%s177 + $0x10] sm:$0xff] %vm529, %v524
      %v531 = vlaneseq
      %v532 = vand.u32 %v531, 127
      %v533 = vadd.s32 %v532, 128
      %v534 = vadd.s32 %v532, 256
      %vm535 = vcmp.lt.s32.totalorder %v532, 0
      %v536 = vsub.s32 0, %v532
      %v537 = vsel %vm535, %v536, %v532
      %v538 = vmul.u32.u64.compose %v537, 3817748708
      %v539 = vextract.low.u32 %v538
      %v540 = vextract.high.u32 %v538
      %v541 = vshrl.u32 %v540, 4
      %v542 = vmul.u32 %v541, 18
      %v543 = vsub.s32 %v537, %v542
      %v544 = vsub.s32 0, %v543
      %v545 = vsel %vm535, %v544, %v543
      %vm546 = vcmp.lt.s32.totalorder %v533, 0
      %v547 = vsub.s32 0, %v533
      %v548 = vsel %vm546, %v547, %v533
      %v549 = vmul.u32.u64.compose %v548, 3817748708
      %v550 = vextract.low.u32 %v549
      %v551 = vextract.high.u32 %v549
      %v552 = vshrl.u32 %v551, 4
      %v553 = vmul.u32 %v552, 18
      %v554 = vsub.s32 %v548, %v553
      %v555 = vsub.s32 0, %v554
      %v556 = vsel %vm546, %v555, %v554
      %vm557 = vcmp.lt.s32.totalorder %v534, 0
      %v558 = vsub.s32 0, %v534
      %v559 = vsel %vm557, %v558, %v534
      %v560 = vmul.u32.u64.compose %v559, 3817748708
      %v561 = vextract.low.u32 %v560
      %v562 = vextract.high.u32 %v560
      %v563 = vshrl.u32 %v562, 4
      %v564 = vmul.u32 %v563, 18
      %v565 = vsub.s32 %v559, %v564
      %v566 = vsub.s32 0, %v565
      %v567 = vsel %vm557, %v566, %v565
      %vm568 = vcmp.ne.s32.totalorder %v545, 0
      %vm569 = vcmp.ne.s32.totalorder %v556, 0
      %vm570 = vcmp.ne.s32.totalorder %v567, 0
      %vm571 = vcmp.lt.s32.totalorder %v545, 0
      %vm572 = vcmp.lt.s32.totalorder %v556, 0
      %vm573 = vcmp.lt.s32.totalorder %v567, 0
      %vm574 = vmand %vm571, %vm568
      %vm575 = vmand %vm572, %vm569
      %vm576 = vmand %vm573, %vm570
      %v577 = vadd.s32 %v545, 18
      %v578 = vadd.s32 %v556, 18
      %v579 = vadd.s32 %v567, 18
      %v580 = vsel %vm574, %v577, %v545
      %v581 = vsel %vm575, %v578, %v556
      %v582 = vsel %vm576, %v579, %v567
      %vm583 = vcmp.lt.s32.totalorder %v580, 16
      %vm584 = vcmp.lt.s32.totalorder %v581, 16
      %vm585 = vcmp.lt.s32.totalorder %v582, 16
      %v586 = vsel %vm583, 1, 0
      %v587 = vsel %vm584, 1, 0
      %v588 = vsel %vm585, 1, 0
      %vm589 = vcmp.eq.s32.totalorder %v586, 1
      %vm590 = vcmp.eq.s32.totalorder %v587, 1
      %vm591 = vcmp.eq.s32.totalorder %v588, 1
      %v592 = vsel %vm589, %v453, 0.0
      %v593 = vsel %vm590, %v455, 0.0
      %v594 = vsel %vm591, %v524, 0.0
      %v595 = vadd.f32 %v592, %v593
      %v596 = vsel %vm529, %v594, 0.0
      %v597 = vadd.f32 %v595, %v596
      %598 = vadd.xlane.f32.xlu0 %v597
      %v599 = vpop.xlane.xlu0 %598
      %vm600 = vcmask 7168
      %601 = vst.msk [vmem:[%s181] sm:$0xff] %vm600, %v599
      %v602 = vmul.f32 %v592, %v592
      %v603 = vmul.f32 %v593, %v593
      %v604 = vmul.f32 %v594, %v594
      %v605 = vadd.f32 %v602, %v603
      %v606 = vsel %vm529, %v604, 0.0
      %v607 = vadd.f32 %v605, %v606
      %608 = vadd.xlane.f32.xlu0 %v607
      %v609 = vpop.xlane.xlu0 %608
      %vm610 = vcmask 15368
      %611 = vst.msk [vmem:[%s181] sm:$0xff] %vm610, %v609
      %p612 = scmp.lt.s32.totalorder %s15, 1
      %s613 = scalar_select %p612, %s15, 1
      %s614 = smul.addr %s613, 3
      %s615 = smul.addr %s614, 8
      %s616 = scalar_lea.vmem %s2, %s615
      %p617 = scmp.lt.s32.totalorder %s15, 1
      %s618 = scalar_select %p617, %s15, 1
      %s619 = smul.addr %s618, 8
      %s620 = scalar_lea.vmem %s3, %s619
      // Predicated region
      $region29: #{spatial_view_conv.2} parent=27 // pred_check
        %p621 = pneg %p80
      $region30: #{spatial_view_conv.2} parent=27 // pred_check_branch
        %623 = sbr.rel (%p621) target = $region32
      $region31: #{spatial_view_conv.2} parent=27 // pred_region
        _
      $region32: #{spatial_view_conv.2} parent=27 // pred_fallthru
        _
      // Predicated region
      $region33: #{spatial_view_conv.2} parent=27 // pred_check
        %p624 = pneg %p106
      $region34: #{spatial_view_conv.2} parent=27 // pred_check_branch
        %626 = sbr.rel (%p624) target = $region36
      $region35: #{spatial_view_conv.2} parent=27 // pred_region
        _
      $region36: #{spatial_view_conv.2} parent=27 // pred_fallthru
        _
    $region28: #{spatial_view_conv.2} parent=5 // pred_fallthru
      _
    %p627 = scmp.le.s32.totalorder 2, %s10
    // Predicated region
    $region37: #{spatial_view_conv.2} parent=5 // pred_check
      %p628 = pneg %p627
    $region38: #{spatial_view_conv.2} parent=5 // pred_check_branch
      %630 = sbr.rel (%p628) target = $region40
    $region39: #{spatial_view_conv.2} parent=5 // pred_region
      %s631 = ssub.s32 %s10, 2
      // Predicated region
      $region41: #{spatial_view_conv.2} parent=39 // pred_check
        %p632 = pneg %p86
      $region42: #{spatial_view_conv.2} parent=39 // pred_check_branch
        %634 = sbr.rel (%p632) target = $region44
      $region43: #{spatial_view_conv.2} parent=39 // pred_region
        %p635 = scmp.lt.s32.totalorder %s16, 1
        %s636 = scalar_select %p635, %s16, 1
        %s637 = smul.addr %s636, 3
        %s638 = smul.addr %s637, 8
        %s639 = scalar_lea.vmem %s2, %s638
      $region44: #{spatial_view_conv.2} parent=39 // pred_fallthru
        _
      // Predicated region
      $region45: #{spatial_view_conv.2} parent=39 // pred_check
        %p640 = pneg %p112
      $region46: #{spatial_view_conv.2} parent=39 // pred_check_branch
        %642 = sbr.rel (%p640) target = $region48
      $region47: #{spatial_view_conv.2} parent=39 // pred_region
        %p643 = scmp.lt.s32.totalorder %s16, 1
        %s644 = scalar_select %p643, %s16, 1
        %s645 = smul.addr %s644, 8
        %s646 = scalar_lea.vmem %s3, %s645
      $region48: #{spatial_view_conv.2} parent=39 // pred_fallthru
        _
    $region40: #{spatial_view_conv.2} parent=5 // pred_fallthru
      _
  $region6: #{spatial_view_conv.2} parent=0 // loop_footer
    %s14 = sadd.s32 1, %s10
  $region7: #{spatial_view_conv.2} parent=0 // loop_footer_branch
    %9 = sbr.rel target = $region3
  $region8: #{spatial_view_conv.2} parent=0 // loop_exit
    _

</llo_original>
